<compile_context>
chip_gen: v5e
topology: v5e:2x2
jax: 0.10.0
libtpu: 0.0.40
codegen_flags: <defaults>
</compile_context>

<pallas_src>
import functools

import jax
import jax.numpy as jnp
from jax.experimental import pallas as pl
from jax.experimental.pallas import tpu as pltpu


def _round_up(x, m):
    return (x + m - 1) // m * m


def _mlp_gaussian_kernel(training,
                         sig_ref, x_ref, w1_ref, b1_ref, w2_ref, b2_ref,
                         w3_ref, b3_ref, *rest):
    """One (tile_b, ·) row tile of the forward pass, fully resident in VMEM."""
    if training:
        n1_ref, n2_ref, o_ref = rest
    else:
        (o_ref,) = rest

    # lin1 + ReLU  (bf16 MXU inputs, f32 accumulation)
    x_bf = x_ref[...].astype(jnp.bfloat16)
    h1 = jnp.dot(x_bf, w1_ref[...], preferred_element_type=jnp.float32)
    h1 = jnp.maximum(h1 + b1_ref[...], 0.0)
    if training:
        # H1 = H1 + randn_like(H1) * sigma1   (noise streamed in, scaled here)
        h1 = h1 + n1_ref[...] * sig_ref[0]

    # lin2 + ReLU
    h2 = jnp.dot(h1.astype(jnp.bfloat16), w2_ref[...],
                 preferred_element_type=jnp.float32)
    h2 = jnp.maximum(h2 + b2_ref[...], 0.0)
    if training:
        h2 = h2 + n2_ref[...] * sig_ref[1]

    # lin3 (no activation), lane-dense 128-wide output tile
    o_ref[...] = jnp.dot(h2.astype(jnp.bfloat16), w3_ref[...],
                         preferred_element_type=jnp.float32) + b3_ref[...]


def net_gaussian_noise_forward(x, params, key, num_outputs, *,
                               sigma1=0.1, sigma2=0.1, training=True,
                               tile_b=128):
    """Flattens X (view(-1, num_inputs)) and runs the Pallas MLP kernel."""
    w1, b1, w2, b2, w3, b3 = params
    k_pad = w1.shape[0]            # padded contraction dim (e.g. 896)
    h1 = w1.shape[1]
    h2 = w2.shape[1]
    n_pad = w3.shape[1]            # padded output dim (e.g. 128)

    batch = x.shape[0]
    x2d = x.reshape(batch, -1)     # keep native dtype; cast to bf16 in-kernel
    num_inputs = x2d.shape[1]
    assert num_inputs <= k_pad and num_outputs <= n_pad

    # Batch tiling: small batches stay a single (multiple-of-8) tile; large
    # batches are split into 128-row tiles over a "parallel" grid axis.
    pb8 = _round_up(batch, 8)
    tb = tile_b if pb8 >= tile_b else pb8
    padded_b = _round_up(batch, tb)
    grid = (padded_b // tb,)

    # Zero-pad batch rows and the 784 -> 896 contraction columns.
    x2d = jnp.pad(x2d, ((0, padded_b - batch), (0, k_pad - num_inputs)))

    sig = jnp.asarray([sigma1, sigma2], dtype=jnp.float32)

    def bcast(shape):              # weights/biases: same block every grid step
        return pl.BlockSpec(shape, lambda i: (0, 0))

    in_specs = [
        pl.BlockSpec(memory_space=pltpu.MemorySpace.SMEM),       # sigmas
        pl.BlockSpec((tb, k_pad), lambda i: (i, 0)),             # x tile
        bcast(w1.shape), bcast(b1.shape),
        bcast(w2.shape), bcast(b2.shape),
        bcast(w3.shape), bcast(b3.shape),
    ]
    args = [sig, x2d, w1, b1, w2, b2, w3, b3]

    if training:
        k1, k2 = jax.random.split(key)
        n1 = jax.random.normal(k1, (padded_b, h1), jnp.float32)
        n2 = jax.random.normal(k2, (padded_b, h2), jnp.float32)
        in_specs += [pl.BlockSpec((tb, h1), lambda i: (i, 0)),
                     pl.BlockSpec((tb, h2), lambda i: (i, 0))]
        args += [n1, n2]

    kernel = functools.partial(_mlp_gaussian_kernel, training)
    out = pl.pallas_call(
        kernel,
        out_shape=jax.ShapeDtypeStruct((padded_b, n_pad), jnp.float32),
        grid=grid,
        in_specs=in_specs,
        out_specs=pl.BlockSpec((tb, n_pad), lambda i: (i, 0)),
        compiler_params=pltpu.CompilerParams(
            dimension_semantics=("parallel",)),   # megacore row split on v7x
    )(*args)

    return out[:batch, :num_outputs]


def init_params(key, num_inputs, num_outputs, num_hiddens1, num_hiddens2):
    """Synthetic init. Weights stored as (in, out) in bf16, padded for tiling:
    contraction dim 784 -> 896 (zero rows of w1), output dim 10 -> 128
    (zero columns of w3 / b3)."""
    k_pad = _round_up(num_inputs, 128)      # 784 -> 896
    n_pad = _round_up(num_outputs, 128)     # 10  -> 128
    k1, k2, k3 = jax.random.split(key, 3)
    scale = 0.01

    w1 = scale * jax.random.normal(k1, (num_inputs, num_hiddens1), jnp.float32)
    w1 = jnp.pad(w1, ((0, k_pad - num_inputs), (0, 0)))
    w2 = scale * jax.random.normal(k2, (num_hiddens1, num_hiddens2), jnp.float32)
    w3 = scale * jax.random.normal(k3, (num_hiddens2, num_outputs), jnp.float32)
    w3 = jnp.pad(w3, ((0, 0), (0, n_pad - num_outputs)))

    b1 = jnp.zeros((1, num_hiddens1), jnp.float32)
    b2 = jnp.zeros((1, num_hiddens2), jnp.float32)
    b3 = jnp.zeros((1, n_pad), jnp.float32)

    # bf16 weights: native MXU input dtype, half the HBM weight traffic.
    return (w1.astype(jnp.bfloat16), b1,
            w2.astype(jnp.bfloat16), b2,
            w3.astype(jnp.bfloat16), b3)


if __name__ == "__main__":
    num_inputs = 28 * 28     # 784
    num_outputs = 10
    num_hiddens1 = 256
    num_hiddens2 = 256
    batch = 8

    key = jax.random.PRNGKey(0)
    kx, kp, kn = jax.random.split(key, 3)

    # Input mirrors flattened MNIST-style images: (B, 1, 28, 28) -> view(-1, 784)
    x = jax.random.normal(kx, (batch, 1, 28, 28), jnp.float32)
    params = init_params(kp, num_inputs, num_outputs, num_hiddens1, num_hiddens2)

    out = net_gaussian_noise_forward(x, params, kn, num_outputs,
                                     sigma1=0.1, sigma2=0.1, training=True)
    out = jax.block_until_ready(out)
    assert out.shape == (batch, num_outputs)
    assert out.dtype == jnp.float32
    assert bool(jnp.all(jnp.isfinite(out)))

    # Eval mode (no noise) also exercises the second kernel variant.
    out_eval = net_gaussian_noise_forward(x, params, kn, num_outputs,
                                          training=False)
    out_eval = jax.block_until_ready(out_eval)
    assert out_eval.shape == (batch, num_outputs)

    print("KERNEL_OK")
</pallas_src>

<mosaic_0001>
module attributes {stable_mosaic.version = 11 : i64} {
  func.func @_mlp_gaussian_kernel(%arg0: i32, %arg1: memref<2xf32, #tpu.memory_space<smem>>, %arg2: memref<8x896xf32, #tpu.memory_space<vmem>>, %arg3: memref<896x256xbf16, #tpu.memory_space<vmem>>, %arg4: memref<1x256xf32, #tpu.memory_space<vmem>>, %arg5: memref<256x256xbf16, #tpu.memory_space<vmem>>, %arg6: memref<1x256xf32, #tpu.memory_space<vmem>>, %arg7: memref<256x128xbf16, #tpu.memory_space<vmem>>, %arg8: memref<1x128xf32, #tpu.memory_space<vmem>>, %arg9: memref<8x256xf32, #tpu.memory_space<vmem>>, %arg10: memref<8x256xf32, #tpu.memory_space<vmem>>, %arg11: memref<8x128xf32, #tpu.memory_space<vmem>>) attributes {dimension_semantics = [#tpu.dimension_semantics<parallel>], iteration_bounds = array<i64: 1>, scalar_prefetch = 0 : i64, scratch_operands = 0 : i64, tpu.core_type = #tpu.core_type<tc>, window_params = [{transform_indices = @transform_0, window_bounds = array<i64: 2>}, {transform_indices = @transform_1, window_bounds = array<i64: 8, 896>}, {pipeline_mode = #tpu.pipeline_mode<synchronous>, transform_indices = @transform_2, window_bounds = array<i64: 896, 256>}, {pipeline_mode = #tpu.pipeline_mode<synchronous>, transform_indices = @transform_3, window_bounds = array<i64: 1, 256>}, {pipeline_mode = #tpu.pipeline_mode<synchronous>, transform_indices = @transform_4, window_bounds = array<i64: 256, 256>}, {pipeline_mode = #tpu.pipeline_mode<synchronous>, transform_indices = @transform_5, window_bounds = array<i64: 1, 256>}, {pipeline_mode = #tpu.pipeline_mode<synchronous>, transform_indices = @transform_6, window_bounds = array<i64: 256, 128>}, {pipeline_mode = #tpu.pipeline_mode<synchronous>, transform_indices = @transform_7, window_bounds = array<i64: 1, 128>}, {transform_indices = @transform_8, window_bounds = array<i64: 8, 256>}, {transform_indices = @transform_9, window_bounds = array<i64: 8, 256>}, {transform_indices = @transform_10, window_bounds = array<i64: 8, 128>}]} {
    %c0 = arith.constant 0 : index
    %c0_0 = arith.constant 0 : index
    %0 = vector.load %arg2[%c0, %c0_0] : memref<8x896xf32, #tpu.memory_space<vmem>>, vector<8x896xf32>
    %1 = arith.truncf %0 : vector<8x896xf32> to vector<8x896xbf16>
    %c0_1 = arith.constant 0 : index
    %c0_2 = arith.constant 0 : index
    %2 = vector.load %arg3[%c0_1, %c0_2] : memref<896x256xbf16, #tpu.memory_space<vmem>>, vector<896x256xbf16>
    %cst = arith.constant dense<0.000000e+00> : vector<8x256xf32>
    %3 = tpu.matmul %1, %2, %cst {dimension_numbers = #tpu.dot_dimension_numbers<[1], [0], [0], [1], [0, 0, 1, 1], [], []>} : vector<8x896xbf16>, vector<896x256xbf16>, vector<8x256xf32> -> vector<8x256xf32>
    %c0_3 = arith.constant 0 : index
    %c0_4 = arith.constant 0 : index
    %4 = vector.load %arg4[%c0_3, %c0_4] : memref<1x256xf32, #tpu.memory_space<vmem>>, vector<1x256xf32>
    %5 = vector.broadcast %4 : vector<1x256xf32> to vector<8x256xf32>
    %6 = arith.addf %3, %5 : vector<8x256xf32>
    %cst_5 = arith.constant 0.000000e+00 : f32
    %7 = vector.broadcast %cst_5 : f32 to vector<8x256xf32>
    %8 = arith.maximumf %6, %7 : vector<8x256xf32>
    %c0_6 = arith.constant 0 : index
    %c0_7 = arith.constant 0 : index
    %9 = vector.load %arg9[%c0_6, %c0_7] : memref<8x256xf32, #tpu.memory_space<vmem>>, vector<8x256xf32>
    %c0_8 = arith.constant 0 : index
    %10 = memref.load %arg1[%c0_8] : memref<2xf32, #tpu.memory_space<smem>>
    %11 = vector.broadcast %10 : f32 to vector<8x256xf32>
    %12 = arith.mulf %9, %11 : vector<8x256xf32>
    %13 = arith.addf %8, %12 : vector<8x256xf32>
    %14 = arith.truncf %13 : vector<8x256xf32> to vector<8x256xbf16>
    %c0_9 = arith.constant 0 : index
    %c0_10 = arith.constant 0 : index
    %15 = vector.load %arg5[%c0_9, %c0_10] : memref<256x256xbf16, #tpu.memory_space<vmem>>, vector<256x256xbf16>
    %cst_11 = arith.constant dense<0.000000e+00> : vector<8x256xf32>
    %16 = tpu.matmul %14, %15, %cst_11 {dimension_numbers = #tpu.dot_dimension_numbers<[1], [0], [0], [1], [0, 0, 1, 1], [], []>} : vector<8x256xbf16>, vector<256x256xbf16>, vector<8x256xf32> -> vector<8x256xf32>
    %c0_12 = arith.constant 0 : index
    %c0_13 = arith.constant 0 : index
    %17 = vector.load %arg6[%c0_12, %c0_13] : memref<1x256xf32, #tpu.memory_space<vmem>>, vector<1x256xf32>
    %18 = vector.broadcast %17 : vector<1x256xf32> to vector<8x256xf32>
    %19 = arith.addf %16, %18 : vector<8x256xf32>
    %cst_14 = arith.constant 0.000000e+00 : f32
    %20 = vector.broadcast %cst_14 : f32 to vector<8x256xf32>
    %21 = arith.maximumf %19, %20 : vector<8x256xf32>
    %c0_15 = arith.constant 0 : index
    %c0_16 = arith.constant 0 : index
    %22 = vector.load %arg10[%c0_15, %c0_16] : memref<8x256xf32, #tpu.memory_space<vmem>>, vector<8x256xf32>
    %c1 = arith.constant 1 : index
    %23 = memref.load %arg1[%c1] : memref<2xf32, #tpu.memory_space<smem>>
    %24 = vector.broadcast %23 : f32 to vector<8x256xf32>
    %25 = arith.mulf %22, %24 : vector<8x256xf32>
    %26 = arith.addf %21, %25 : vector<8x256xf32>
    %27 = arith.truncf %26 : vector<8x256xf32> to vector<8x256xbf16>
    %c0_17 = arith.constant 0 : index
    %c0_18 = arith.constant 0 : index
    %28 = vector.load %arg7[%c0_17, %c0_18] : memref<256x128xbf16, #tpu.memory_space<vmem>>, vector<256x128xbf16>
    %cst_19 = arith.constant dense<0.000000e+00> : vector<8x128xf32>
    %29 = tpu.matmul %27, %28, %cst_19 {dimension_numbers = #tpu.dot_dimension_numbers<[1], [0], [0], [1], [0, 0, 1, 1], [], []>} : vector<8x256xbf16>, vector<256x128xbf16>, vector<8x128xf32> -> vector<8x128xf32>
    %c0_20 = arith.constant 0 : index
    %c0_21 = arith.constant 0 : index
    %30 = vector.load %arg8[%c0_20, %c0_21] : memref<1x128xf32, #tpu.memory_space<vmem>>, vector<1x128xf32>
    %31 = vector.broadcast %30 : vector<1x128xf32> to vector<8x128xf32>
    %32 = arith.addf %29, %31 : vector<8x128xf32>
    %c0_22 = arith.constant 0 : index
    %c0_23 = arith.constant 0 : index
    %33 = vector.load %arg11[%c0_22, %c0_23] : memref<8x128xf32, #tpu.memory_space<vmem>>, vector<8x128xf32>
    tpu.vector_store %arg11[%c0_22, %c0_23], %32 {strides = array<i32>} : memref<8x128xf32, #tpu.memory_space<vmem>>, vector<8x128xf32>,
    return
  }
  func.func @transform_0(%arg0: i32) -> i32 {
    %c0_i32 = arith.constant 0 : i32
    %c0_i32_0 = arith.constant 0 : i32
    return %c0_i32 : i32
  }
  func.func @transform_1(%arg0: i32) -> (i32, i32) {
    %c0_i32 = arith.constant 0 : i32
    %c0_i32_0 = arith.constant 0 : i32
    return %arg0, %c0_i32 : i32, i32
  }
  func.func @transform_2(%arg0: i32) -> (i32, i32) {
    %c0_i32 = arith.constant 0 : i32
    %c0_i32_0 = arith.constant 0 : i32
    %c0_i32_1 = arith.constant 0 : i32
    return %c0_i32, %c0_i32_0 : i32, i32
  }
  func.func @transform_3(%arg0: i32) -> (i32, i32) {
    %c0_i32 = arith.constant 0 : i32
    %c0_i32_0 = arith.constant 0 : i32
    %c0_i32_1 = arith.constant 0 : i32
    return %c0_i32, %c0_i32_0 : i32, i32
  }
  func.func @transform_4(%arg0: i32) -> (i32, i32) {
    %c0_i32 = arith.constant 0 : i32
    %c0_i32_0 = arith.constant 0 : i32
    %c0_i32_1 = arith.constant 0 : i32
    return %c0_i32, %c0_i32_0 : i32, i32
  }
  func.func @transform_5(%arg0: i32) -> (i32, i32) {
    %c0_i32 = arith.constant 0 : i32
    %c0_i32_0 = arith.constant 0 : i32
    %c0_i32_1 = arith.constant 0 : i32
    return %c0_i32, %c0_i32_0 : i32, i32
  }
  func.func @transform_6(%arg0: i32) -> (i32, i32) {
    %c0_i32 = arith.constant 0 : i32
    %c0_i32_0 = arith.constant 0 : i32
    %c0_i32_1 = arith.constant 0 : i32
    return %c0_i32, %c0_i32_0 : i32, i32
  }
  func.func @transform_7(%arg0: i32) -> (i32, i32) {
    %c0_i32 = arith.constant 0 : i32
    %c0_i32_0 = arith.constant 0 : i32
    %c0_i32_1 = arith.constant 0 : i32
    return %c0_i32, %c0_i32_0 : i32, i32
  }
  func.func @transform_8(%arg0: i32) -> (i32, i32) {
    %c0_i32 = arith.constant 0 : i32
    %c0_i32_0 = arith.constant 0 : i32
    return %arg0, %c0_i32 : i32, i32
  }
  func.func @transform_9(%arg0: i32) -> (i32, i32) {
    %c0_i32 = arith.constant 0 : i32
    %c0_i32_0 = arith.constant 0 : i32
    return %arg0, %c0_i32 : i32, i32
  }
  func.func @transform_10(%arg0: i32) -> (i32, i32) {
    %c0_i32 = arith.constant 0 : i32
    %c0_i32_0 = arith.constant 0 : i32
    return %arg0, %c0_i32 : i32, i32
  }
}

</mosaic_0001>

<llo_original>
// kernel: tpu_custom_call.1
$region0: #{tpu_custom_call.1}
  #allocation0 [shape = 'u32[]', space=smem, size = 0x4, offset = 0x4, fixed_abs, tag = 'smem constant byte address 0x4 - core index']
  #allocation1 [shape = 'u32[72,128]{1,0:T(1,128)}', space=vmem, size = 0x9000, scoped, tag = 'internal scratch']
  %s0 = inlined_call_operand.hbm [shape: f32[2], index: 0, kind: input, shape index: {}]
  %s1 = inlined_call_operand.hbm [shape: f32[8,896], index: 1, kind: input, shape index: {}]
  %s2 = inlined_call_operand.hbm [shape: bf16[896,256], index: 2, kind: input, shape index: {}]
  %s3 = inlined_call_operand.vmem [shape: f32[1,256], index: 3, kind: input, shape index: {}]
  %s4 = inlined_call_operand.hbm [shape: bf16[256,256], index: 4, kind: input, shape index: {}]
  %s5 = inlined_call_operand.vmem [shape: f32[1,256], index: 5, kind: input, shape index: {}]
  %s6 = inlined_call_operand.hbm [shape: bf16[256,128], index: 6, kind: input, shape index: {}]
  %s7 = inlined_call_operand.vmem [shape: f32[1,128], index: 7, kind: input, shape index: {}]
  %s8 = inlined_call_operand.hbm [shape: f32[8,256], index: 8, kind: input, shape index: {}]
  %s9 = inlined_call_operand.hbm [shape: f32[8,256], index: 9, kind: input, shape index: {}]
  %s10 = inlined_call_operand.hbm [shape: f32[8,128], index: 10, kind: output, shape index: {}]
  %s11 = sld [smem:[#allocation0]]
  $region78: #{tpu_custom_call.1} parent=0
    _
  %s13 = ssub.s32 1, %s11
  %s14 = scalar_select 0, %s13, %s11
  $region1: #{tpu_custom_call.1} parent=0
    #allocation2 [shape = 'u8[512]{0}', space=smem, size = 0x200, scoped, tag = 'input window, operand 0, single buffered']
    #allocation3 [shape = 's32[1]{0}', space=sflag, size = 0x4, scoped, tag = 'scoped memory for tpu_custom_call.1']
    #allocation4 [shape = 's32[1]{0}', space=sflag, size = 0x4, scoped, tag = 'scoped memory for tpu_custom_call.1']
    #allocation5 [shape = 's32[1]{0}', space=sflag, size = 0x4, scoped, tag = 'scoped memory for tpu_custom_call.1']
    #allocation6 [shape = 'u8[28672]{0}', space=vmem, size = 0x7000, scoped, tag = 'input window, operand 1, single buffered']
    #allocation7 [shape = 'u8[458752]{0}', space=vmem, size = 0x70000, scoped, tag = 'input window, operand 2, single buffered']
    #allocation8 [shape = 's32[1]{0}', space=sflag, size = 0x4, scoped, tag = 'scoped memory for tpu_custom_call.1']
    #allocation9 [shape = 'u8[131072]{0}', space=vmem, size = 0x20000, scoped, tag = 'input window, operand 4, single buffered']
    #allocation10 [shape = 'u8[65536]{0}', space=vmem, size = 0x10000, scoped, tag = 'input window, operand 6, single buffered']
    #allocation11 [shape = 's32[1]{0}', space=sflag, size = 0x4, scoped, tag = 'scoped memory for tpu_custom_call.1']
    #allocation12 [shape = 'u8[8192]{0}', space=vmem, size = 0x2000, scoped, tag = 'input window, operand 8, single buffered']
    #allocation13 [shape = 'u8[8192]{0}', space=vmem, size = 0x2000, scoped, tag = 'input window, operand 9, single buffered']
    #allocation14 [shape = 's32[1]{0}', space=sflag, size = 0x4, scoped, tag = 'scoped memory for tpu_custom_call.1']
    #allocation15 [shape = 'u8[4096]{0}', space=vmem, size = 0x1000, scoped, tag = 'output window, operand 0, single buffered']
    %15 = vsyncpa [#allocation5], 0
    %16 = vsyncpa [#allocation3], 0
    %17 = vsyncpa [#allocation8], 0
    %18 = vsyncpa [#allocation11], 0
    %19 = vsyncpa [#allocation14], 0
    %20 = vsyncpa [#allocation4], 0
    // Predicated region
    $region2: #{tpu_custom_call.1} parent=1 // pred_check
      _
    $region3: #{tpu_custom_call.1} parent=1 // pred_check_branch
      %22 = sbr.rel (0) target = $region5
    $region4: #{tpu_custom_call.1} parent=1 // pred_region
      %24 = vsyncadd [#allocation5], 0
      %s26 = sshll.u32 %s0, 4
      %s27 = int_to_ptr.hbm [resolvable:$true] %s26
      %29 = dma.hbm_to_smem %s27, 16, [#allocation2], [#allocation5]
    $region5: #{tpu_custom_call.1} parent=1 // pred_fallthru
      _
    // Predicated region
    $region6: #{tpu_custom_call.1} parent=1 // pred_check
      _
    $region7: #{tpu_custom_call.1} parent=1 // pred_check_branch
      %31 = sbr.rel (0) target = $region9
    $region8: #{tpu_custom_call.1} parent=1 // pred_region
      %33 = vsyncadd [#allocation3], 0
      %s35 = sshll.u32 %s1, 4
      %s36 = int_to_ptr.hbm [resolvable:$true] %s35
      %s37 = sshll.u32 [#allocation6], 4
      %s38 = int_to_ptr.vmem [resolvable:$true] %s37
      %40 = dma.hbm_to_vmem [thread:$0]  %s36, 896, %s38, [#allocation3]
    $region9: #{tpu_custom_call.1} parent=1 // pred_fallthru
      _
    // Predicated region
    $region10: #{tpu_custom_call.1} parent=1 // pred_check
      _
    $region11: #{tpu_custom_call.1} parent=1 // pred_check_branch
      %42 = sbr.rel (0) target = $region13
    $region12: #{tpu_custom_call.1} parent=1 // pred_region
      %44 = vsyncadd [#allocation8], 0
      %s45 = sshll.u32 %s2, 4
      %s46 = int_to_ptr.hbm [resolvable:$true] %s45
      %s47 = sshll.u32 [#allocation7], 4
      %s48 = int_to_ptr.vmem [resolvable:$true] %s47
      %53 = dma.hbm_to_vmem [thread:$0]  %s46, 14336, %s48, [#allocation8], 128, 128, 8
    $region13: #{tpu_custom_call.1} parent=1 // pred_fallthru
      _
    // Predicated region
    $region14: #{tpu_custom_call.1} parent=1 // pred_check
      _
    $region15: #{tpu_custom_call.1} parent=1 // pred_check_branch
      %55 = sbr.rel (0) target = $region17
    $region16: #{tpu_custom_call.1} parent=1 // pred_region
      _
    $region17: #{tpu_custom_call.1} parent=1 // pred_fallthru
      _
    // Predicated region
    $region18: #{tpu_custom_call.1} parent=1 // pred_check
      _
    $region19: #{tpu_custom_call.1} parent=1 // pred_check_branch
      %57 = sbr.rel (0) target = $region21
    $region20: #{tpu_custom_call.1} parent=1 // pred_region
      %59 = vsyncadd [#allocation8], 0
      %s60 = sshll.u32 %s4, 4
      %s61 = int_to_ptr.hbm [resolvable:$true] %s60
      %s62 = sshll.u32 [#allocation9], 4
      %s63 = int_to_ptr.vmem [resolvable:$true] %s62
      %68 = dma.hbm_to_vmem [thread:$0]  %s61, 4096, %s63, [#allocation8], 128, 128, 8
    $region21: #{tpu_custom_call.1} parent=1 // pred_fallthru
      _
    // Predicated region
    $region22: #{tpu_custom_call.1} parent=1 // pred_check
      _
    $region23: #{tpu_custom_call.1} parent=1 // pred_check_branch
      %70 = sbr.rel (0) target = $region25
    $region24: #{tpu_custom_call.1} parent=1 // pred_region
      _
    $region25: #{tpu_custom_call.1} parent=1 // pred_fallthru
      _
    // Predicated region
    $region26: #{tpu_custom_call.1} parent=1 // pred_check
      _
    $region27: #{tpu_custom_call.1} parent=1 // pred_check_branch
      %72 = sbr.rel (0) target = $region29
    $region28: #{tpu_custom_call.1} parent=1 // pred_region
      %74 = vsyncadd [#allocation11], 0
      %s75 = sshll.u32 %s6, 4
      %s76 = int_to_ptr.hbm [resolvable:$true] %s75
      %s77 = sshll.u32 [#allocation10], 4
      %s78 = int_to_ptr.vmem [resolvable:$true] %s77
      %83 = dma.hbm_to_vmem [thread:$0]  %s76, 2048, %s78, [#allocation11], 64, 64, 4
    $region29: #{tpu_custom_call.1} parent=1 // pred_fallthru
      _
    // Predicated region
    $region30: #{tpu_custom_call.1} parent=1 // pred_check
      _
    $region31: #{tpu_custom_call.1} parent=1 // pred_check_branch
      %85 = sbr.rel (0) target = $region33
    $region32: #{tpu_custom_call.1} parent=1 // pred_region
      _
    $region33: #{tpu_custom_call.1} parent=1 // pred_fallthru
      _
    // Predicated region
    $region34: #{tpu_custom_call.1} parent=1 // pred_check
      _
    $region35: #{tpu_custom_call.1} parent=1 // pred_check_branch
      %87 = sbr.rel (0) target = $region37
    $region36: #{tpu_custom_call.1} parent=1 // pred_region
      %89 = vsyncadd [#allocation11], 0
      %s91 = sshll.u32 %s8, 4
      %s92 = int_to_ptr.hbm [resolvable:$true] %s91
      %s93 = sshll.u32 [#allocation12], 4
      %s94 = int_to_ptr.vmem [resolvable:$true] %s93
      %96 = dma.hbm_to_vmem [thread:$0]  %s92, 256, %s94, [#allocation11]
    $region37: #{tpu_custom_call.1} parent=1 // pred_fallthru
      _
    // Predicated region
    $region38: #{tpu_custom_call.1} parent=1 // pred_check
      _
    $region39: #{tpu_custom_call.1} parent=1 // pred_check_branch
      %98 = sbr.rel (0) target = $region41
    $region40: #{tpu_custom_call.1} parent=1 // pred_region
      %100 = vsyncadd [#allocation14], 0
      %s102 = sshll.u32 %s9, 4
      %s103 = int_to_ptr.hbm [resolvable:$true] %s102
      %s104 = sshll.u32 [#allocation13], 4
      %s105 = int_to_ptr.vmem [resolvable:$true] %s104
      %107 = dma.hbm_to_vmem [thread:$0]  %s103, 256, %s105, [#allocation14]
    $region41: #{tpu_custom_call.1} parent=1 // pred_fallthru
      _
    // Predicated region
    $region42: #{tpu_custom_call.1} parent=1 // pred_check
      _
    $region43: #{tpu_custom_call.1} parent=1 // pred_check_branch
      %109 = sbr.rel (0) target = $region45
    $region44: #{tpu_custom_call.1} parent=1 // pred_region
      %111 = dma.done [#allocation5], 16
    $region45: #{tpu_custom_call.1} parent=1 // pred_fallthru
      _
    // Predicated region
    $region46: #{tpu_custom_call.1} parent=1 // pred_check
      _
    $region47: #{tpu_custom_call.1} parent=1 // pred_check_branch
      %113 = sbr.rel (0) target = $region49
    $region48: #{tpu_custom_call.1} parent=1 // pred_region
      %115 = dma.done [#allocation3], 896
    $region49: #{tpu_custom_call.1} parent=1 // pred_fallthru
      _
    // Predicated region
    $region50: #{tpu_custom_call.1} parent=1 // pred_check
      _
    $region51: #{tpu_custom_call.1} parent=1 // pred_check_branch
      %117 = sbr.rel (0) target = $region53
    $region52: #{tpu_custom_call.1} parent=1 // pred_region
      %119 = dma.done [#allocation8], 14336
    $region53: #{tpu_custom_call.1} parent=1 // pred_fallthru
      _
    // Predicated region
    $region54: #{tpu_custom_call.1} parent=1 // pred_check
      _
    $region55: #{tpu_custom_call.1} parent=1 // pred_check_branch
      %121 = sbr.rel (0) target = $region57
    $region56: #{tpu_custom_call.1} parent=1 // pred_region
      %123 = dma.done [#allocation8], 4096
    $region57: #{tpu_custom_call.1} parent=1 // pred_fallthru
      _
    // Predicated region
    $region58: #{tpu_custom_call.1} parent=1 // pred_check
      _
    $region59: #{tpu_custom_call.1} parent=1 // pred_check_branch
      %125 = sbr.rel (0) target = $region61
    $region60: #{tpu_custom_call.1} parent=1 // pred_region
      %127 = dma.done [#allocation11], 2048
    $region61: #{tpu_custom_call.1} parent=1 // pred_fallthru
      _
    // Predicated region
    $region62: #{tpu_custom_call.1} parent=1 // pred_check
      _
    $region63: #{tpu_custom_call.1} parent=1 // pred_check_branch
      %129 = sbr.rel (0) target = $region65
    $region64: #{tpu_custom_call.1} parent=1 // pred_region
      %131 = dma.done [#allocation11], 256
    $region65: #{tpu_custom_call.1} parent=1 // pred_fallthru
      _
    // Predicated region
    $region66: #{tpu_custom_call.1} parent=1 // pred_check
      _
    $region67: #{tpu_custom_call.1} parent=1 // pred_check_branch
      %133 = sbr.rel (0) target = $region69
    $region68: #{tpu_custom_call.1} parent=1 // pred_region
      %135 = dma.done [#allocation14], 256
    $region69: #{tpu_custom_call.1} parent=1 // pred_fallthru
      _
    %136 = sfence
    %v137 = vld [vmem:[#allocation6] sm:$0xff]
    %v138 = vld [vmem:[#allocation6 + $0x8] sm:$0xff]
    %v139 = vld [vmem:[#allocation6 + $0x10] sm:$0xff]
    %v140 = vld [vmem:[#allocation6 + $0x18] sm:$0xff]
    %v141 = vld [vmem:[#allocation6 + $0x20] sm:$0xff]
    %v142 = vld [vmem:[#allocation6 + $0x28] sm:$0xff]
    %v143 = vld [vmem:[#allocation6 + $0x30] sm:$0xff]
    %v144 = vpack.c.bf16 %v137, %v137
    %v145 = vpack.c.bf16 %v138, %v138
    %v146 = vpack.c.bf16 %v139, %v139
    %v147 = vpack.c.bf16 %v140, %v140
    %v148 = vpack.c.bf16 %v141, %v141
    %v149 = vpack.c.bf16 %v142, %v142
    %v150 = vpack.c.bf16 %v143, %v143
    %v151 = vld [vmem:[#allocation7] sm:$0xff]
    %v152 = vld [vmem:[#allocation7 + $0x8] sm:$0xff]
    %v153 = vld [vmem:[#allocation7 + $0x10] sm:$0xff]
    %v154 = vld [vmem:[#allocation7 + $0x18] sm:$0xff]
    %v155 = vld [vmem:[#allocation7 + $0x20] sm:$0xff]
    %v156 = vld [vmem:[#allocation7 + $0x28] sm:$0xff]
    %v157 = vld [vmem:[#allocation7 + $0x30] sm:$0xff]
    %v158 = vld [vmem:[#allocation7 + $0x38] sm:$0xff]
    %v159 = vld [vmem:[#allocation7 + $0x40] sm:$0xff]
    %v160 = vld [vmem:[#allocation7 + $0x48] sm:$0xff]
    %v161 = vld [vmem:[#allocation7 + $0x50] sm:$0xff]
    %v162 = vld [vmem:[#allocation7 + $0x58] sm:$0xff]
    %v163 = vld [vmem:[#allocation7 + $0x60] sm:$0xff]
    %v164 = vld [vmem:[#allocation7 + $0x68] sm:$0xff]
    %v165 = vld [vmem:[#allocation7 + $0x70] sm:$0xff]
    %v166 = vld [vmem:[#allocation7 + $0x78] sm:$0xff]
    %v167 = vld [vmem:[#allocation7 + $0x80] sm:$0xff]
    %v168 = vld [vmem:[#allocation7 + $0x88] sm:$0xff]
    %v169 = vld [vmem:[#allocation7 + $0x90] sm:$0xff]
    %v170 = vld [vmem:[#allocation7 + $0x98] sm:$0xff]
    %v171 = vld [vmem:[#allocation7 + $0xa0] sm:$0xff]
    %v172 = vld [vmem:[#allocation7 + $0xa8] sm:$0xff]
    %v173 = vld [vmem:[#allocation7 + $0xb0] sm:$0xff]
    %v174 = vld [vmem:[#allocation7 + $0xb8] sm:$0xff]
    %v175 = vld [vmem:[#allocation7 + $0xc0] sm:$0xff]
    %v176 = vld [vmem:[#allocation7 + $0xc8] sm:$0xff]
    %v177 = vld [vmem:[#allocation7 + $0xd0] sm:$0xff]
    %v178 = vld [vmem:[#allocation7 + $0xd8] sm:$0xff]
    %v179 = vld [vmem:[#allocation7 + $0xe0] sm:$0xff]
    %v180 = vld [vmem:[#allocation7 + $0xe8] sm:$0xff]
    %v181 = vld [vmem:[#allocation7 + $0xf0] sm:$0xff]
    %v182 = vld [vmem:[#allocation7 + $0xf8] sm:$0xff]
    %v183 = vld [vmem:[#allocation7 + $0x100] sm:$0xff]
    %v184 = vld [vmem:[#allocation7 + $0x108] sm:$0xff]
    %v185 = vld [vmem:[#allocation7 + $0x110] sm:$0xff]
    %v186 = vld [vmem:[#allocation7 + $0x118] sm:$0xff]
    %v187 = vld [vmem:[#allocation7 + $0x120] sm:$0xff]
    %v188 = vld [vmem:[#allocation7 + $0x128] sm:$0xff]
    %v189 = vld [vmem:[#allocation7 + $0x130] sm:$0xff]
    %v190 = vld [vmem:[#allocation7 + $0x138] sm:$0xff]
    %v191 = vld [vmem:[#allocation7 + $0x140] sm:$0xff]
    %v192 = vld [vmem:[#allocation7 + $0x148] sm:$0xff]
    %v193 = vld [vmem:[#allocation7 + $0x150] sm:$0xff]
    %v194 = vld [vmem:[#allocation7 + $0x158] sm:$0xff]
    %v195 = vld [vmem:[#allocation7 + $0x160] sm:$0xff]
    %v196 = vld [vmem:[#allocation7 + $0x168] sm:$0xff]
    %v197 = vld [vmem:[#allocation7 + $0x170] sm:$0xff]
    %v198 = vld [vmem:[#allocation7 + $0x178] sm:$0xff]
    %v199 = vld [vmem:[#allocation7 + $0x180] sm:$0xff]
    %v200 = vld [vmem:[#allocation7 + $0x188] sm:$0xff]
    %v201 = vld [vmem:[#allocation7 + $0x190] sm:$0xff]
    %v202 = vld [vmem:[#allocation7 + $0x198] sm:$0xff]
    %v203 = vld [vmem:[#allocation7 + $0x1a0] sm:$0xff]
    %v204 = vld [vmem:[#allocation7 + $0x1a8] sm:$0xff]
    %v205 = vld [vmem:[#allocation7 + $0x1b0] sm:$0xff]
    %v206 = vld [vmem:[#allocation7 + $0x1b8] sm:$0xff]
    %v207 = vld [vmem:[#allocation7 + $0x1c0] sm:$0xff]
    %v208 = vld [vmem:[#allocation7 + $0x1c8] sm:$0xff]
    %v209 = vld [vmem:[#allocation7 + $0x1d0] sm:$0xff]
    %v210 = vld [vmem:[#allocation7 + $0x1d8] sm:$0xff]
    %v211 = vld [vmem:[#allocation7 + $0x1e0] sm:$0xff]
    %v212 = vld [vmem:[#allocation7 + $0x1e8] sm:$0xff]
    %v213 = vld [vmem:[#allocation7 + $0x1f0] sm:$0xff]
    %v214 = vld [vmem:[#allocation7 + $0x1f8] sm:$0xff]
    %v215 = vld [vmem:[#allocation7 + $0x200] sm:$0xff]
    %v216 = vld [vmem:[#allocation7 + $0x208] sm:$0xff]
    %v217 = vld [vmem:[#allocation7 + $0x210] sm:$0xff]
    %v218 = vld [vmem:[#allocation7 + $0x218] sm:$0xff]
    %v219 = vld [vmem:[#allocation7 + $0x220] sm:$0xff]
    %v220 = vld [vmem:[#allocation7 + $0x228] sm:$0xff]
    %v221 = vld [vmem:[#allocation7 + $0x230] sm:$0xff]
    %v222 = vld [vmem:[#allocation7 + $0x238] sm:$0xff]
    %v223 = vld [vmem:[#allocation7 + $0x240] sm:$0xff]
    %v224 = vld [vmem:[#allocation7 + $0x248] sm:$0xff]
    %v225 = vld [vmem:[#allocation7 + $0x250] sm:$0xff]
    %v226 = vld [vmem:[#allocation7 + $0x258] sm:$0xff]
    %v227 = vld [vmem:[#allocation7 + $0x260] sm:$0xff]
    %v228 = vld [vmem:[#allocation7 + $0x268] sm:$0xff]
    %v229 = vld [vmem:[#allocation7 + $0x270] sm:$0xff]
    %v230 = vld [vmem:[#allocation7 + $0x278] sm:$0xff]
    %v231 = vld [vmem:[#allocation7 + $0x280] sm:$0xff]
    %v232 = vld [vmem:[#allocation7 + $0x288] sm:$0xff]
    %v233 = vld [vmem:[#allocation7 + $0x290] sm:$0xff]
    %v234 = vld [vmem:[#allocation7 + $0x298] sm:$0xff]
    %v235 = vld [vmem:[#allocation7 + $0x2a0] sm:$0xff]
    %v236 = vld [vmem:[#allocation7 + $0x2a8] sm:$0xff]
    %v237 = vld [vmem:[#allocation7 + $0x2b0] sm:$0xff]
    %v238 = vld [vmem:[#allocation7 + $0x2b8] sm:$0xff]
    %v239 = vld [vmem:[#allocation7 + $0x2c0] sm:$0xff]
    %v240 = vld [vmem:[#allocation7 + $0x2c8] sm:$0xff]
    %v241 = vld [vmem:[#allocation7 + $0x2d0] sm:$0xff]
    %v242 = vld [vmem:[#allocation7 + $0x2d8] sm:$0xff]
    %v243 = vld [vmem:[#allocation7 + $0x2e0] sm:$0xff]
    %v244 = vld [vmem:[#allocation7 + $0x2e8] sm:$0xff]
    %v245 = vld [vmem:[#allocation7 + $0x2f0] sm:$0xff]
    %v246 = vld [vmem:[#allocation7 + $0x2f8] sm:$0xff]
    %v247 = vld [vmem:[#allocation7 + $0x300] sm:$0xff]
    %v248 = vld [vmem:[#allocation7 + $0x308] sm:$0xff]
    %v249 = vld [vmem:[#allocation7 + $0x310] sm:$0xff]
    %v250 = vld [vmem:[#allocation7 + $0x318] sm:$0xff]
    %v251 = vld [vmem:[#allocation7 + $0x320] sm:$0xff]
    %v252 = vld [vmem:[#allocation7 + $0x328] sm:$0xff]
    %v253 = vld [vmem:[#allocation7 + $0x330] sm:$0xff]
    %v254 = vld [vmem:[#allocation7 + $0x338] sm:$0xff]
    %v255 = vld [vmem:[#allocation7 + $0x340] sm:$0xff]
    %v256 = vld [vmem:[#allocation7 + $0x348] sm:$0xff]
    %v257 = vld [vmem:[#allocation7 + $0x350] sm:$0xff]
    %v258 = vld [vmem:[#allocation7 + $0x358] sm:$0xff]
    %v259 = vld [vmem:[#allocation7 + $0x360] sm:$0xff]
    %v260 = vld [vmem:[#allocation7 + $0x368] sm:$0xff]
    %v261 = vld [vmem:[#allocation7 + $0x370] sm:$0xff]
    %v262 = vld [vmem:[#allocation7 + $0x378] sm:$0xff]
    %v263 = vld [vmem:[%s3] sm:$0x3]
    %v265 = vperm.slane %v263, 0
    %v266 = vperm.slane %v263, 1
    %v381 = vunpack.c.l.b16 %v151
    %v382 = vunpack.c.h.b16 %v151
    %v383 = vunpack.c.l.b16 %v152
    %v384 = vunpack.c.h.b16 %v152
    %v385 = vunpack.c.l.b16 %v153
    %v386 = vunpack.c.h.b16 %v153
    %v387 = vunpack.c.l.b16 %v154
    %v388 = vunpack.c.h.b16 %v154
    %v389 = vunpack.c.l.b16 %v155
    %v390 = vunpack.c.h.b16 %v155
    %v391 = vunpack.c.l.b16 %v156
    %v392 = vunpack.c.h.b16 %v156
    %v393 = vunpack.c.l.b16 %v157
    %v394 = vunpack.c.h.b16 %v157
    %v395 = vunpack.c.l.b16 %v158
    %v396 = vunpack.c.h.b16 %v158
    %v397 = vunpack.c.l.b16 %v159
    %v398 = vunpack.c.h.b16 %v159
    %v399 = vunpack.c.l.b16 %v160
    %v400 = vunpack.c.h.b16 %v160
    %v401 = vunpack.c.l.b16 %v161
    %v402 = vunpack.c.h.b16 %v161
    %v403 = vunpack.c.l.b16 %v162
    %v404 = vunpack.c.h.b16 %v162
    %v405 = vunpack.c.l.b16 %v163
    %v406 = vunpack.c.h.b16 %v163
    %v407 = vunpack.c.l.b16 %v164
    %v408 = vunpack.c.h.b16 %v164
    %v409 = vunpack.c.l.b16 %v165
    %v410 = vunpack.c.h.b16 %v165
    %v411 = vunpack.c.l.b16 %v166
    %v412 = vunpack.c.h.b16 %v166
    %v413 = vunpack.c.l.b16 %v167
    %v414 = vunpack.c.h.b16 %v167
    %v415 = vunpack.c.l.b16 %v168
    %v416 = vunpack.c.h.b16 %v168
    %v417 = vunpack.c.l.b16 %v169
    %v418 = vunpack.c.h.b16 %v169
    %v419 = vunpack.c.l.b16 %v170
    %v420 = vunpack.c.h.b16 %v170
    %v421 = vunpack.c.l.b16 %v171
    %v422 = vunpack.c.h.b16 %v171
    %v423 = vunpack.c.l.b16 %v172
    %v424 = vunpack.c.h.b16 %v172
    %v425 = vunpack.c.l.b16 %v173
    %v426 = vunpack.c.h.b16 %v173
    %v427 = vunpack.c.l.b16 %v174
    %v428 = vunpack.c.h.b16 %v174
    %v429 = vunpack.c.l.b16 %v175
    %v430 = vunpack.c.h.b16 %v175
    %v431 = vunpack.c.l.b16 %v176
    %v432 = vunpack.c.h.b16 %v176
    %v433 = vunpack.c.l.b16 %v177
    %v434 = vunpack.c.h.b16 %v177
    %v435 = vunpack.c.l.b16 %v178
    %v436 = vunpack.c.h.b16 %v178
    %v437 = vunpack.c.l.b16 %v179
    %v438 = vunpack.c.h.b16 %v179
    %v439 = vunpack.c.l.b16 %v180
    %v440 = vunpack.c.h.b16 %v180
    %v441 = vunpack.c.l.b16 %v181
    %v442 = vunpack.c.h.b16 %v181
    %v443 = vunpack.c.l.b16 %v182
    %v444 = vunpack.c.h.b16 %v182
    %v445 = vunpack.c.l.b16 %v183
    %v446 = vunpack.c.h.b16 %v183
    %v447 = vunpack.c.l.b16 %v184
    %v448 = vunpack.c.h.b16 %v184
    %v449 = vunpack.c.l.b16 %v185
    %v450 = vunpack.c.h.b16 %v185
    %v451 = vunpack.c.l.b16 %v186
    %v452 = vunpack.c.h.b16 %v186
    %v453 = vunpack.c.l.b16 %v187
    %v454 = vunpack.c.h.b16 %v187
    %v455 = vunpack.c.l.b16 %v188
    %v456 = vunpack.c.h.b16 %v188
    %v457 = vunpack.c.l.b16 %v189
    %v458 = vunpack.c.h.b16 %v189
    %v459 = vunpack.c.l.b16 %v190
    %v460 = vunpack.c.h.b16 %v190
    %v461 = vunpack.c.l.b16 %v191
    %v462 = vunpack.c.h.b16 %v191
    %v463 = vunpack.c.l.b16 %v192
    %v464 = vunpack.c.h.b16 %v192
    %v465 = vunpack.c.l.b16 %v193
    %v466 = vunpack.c.h.b16 %v193
    %v467 = vunpack.c.l.b16 %v194
    %v468 = vunpack.c.h.b16 %v194
    %v469 = vunpack.c.l.b16 %v195
    %v470 = vunpack.c.h.b16 %v195
    %v471 = vunpack.c.l.b16 %v196
    %v472 = vunpack.c.h.b16 %v196
    %v473 = vunpack.c.l.b16 %v197
    %v474 = vunpack.c.h.b16 %v197
    %v475 = vunpack.c.l.b16 %v198
    %v476 = vunpack.c.h.b16 %v198
    %v477 = vunpack.c.l.b16 %v199
    %v478 = vunpack.c.h.b16 %v199
    %v479 = vunpack.c.l.b16 %v200
    %v480 = vunpack.c.h.b16 %v200
    %v481 = vunpack.c.l.b16 %v201
    %v482 = vunpack.c.h.b16 %v201
    %v483 = vunpack.c.l.b16 %v202
    %v484 = vunpack.c.h.b16 %v202
    %v485 = vunpack.c.l.b16 %v203
    %v486 = vunpack.c.h.b16 %v203
    %v487 = vunpack.c.l.b16 %v204
    %v488 = vunpack.c.h.b16 %v204
    %v489 = vunpack.c.l.b16 %v205
    %v490 = vunpack.c.h.b16 %v205
    %v491 = vunpack.c.l.b16 %v206
    %v492 = vunpack.c.h.b16 %v206
    %v493 = vunpack.c.l.b16 %v207
    %v494 = vunpack.c.h.b16 %v207
    %v495 = vunpack.c.l.b16 %v208
    %v496 = vunpack.c.h.b16 %v208
    %v497 = vunpack.c.l.b16 %v209
    %v498 = vunpack.c.h.b16 %v209
    %v499 = vunpack.c.l.b16 %v210
    %v500 = vunpack.c.h.b16 %v210
    %v501 = vunpack.c.l.b16 %v211
    %v502 = vunpack.c.h.b16 %v211
    %v503 = vunpack.c.l.b16 %v212
    %v504 = vunpack.c.h.b16 %v212
    %v505 = vunpack.c.l.b16 %v213
    %v506 = vunpack.c.h.b16 %v213
    %v507 = vunpack.c.l.b16 %v214
    %v508 = vunpack.c.h.b16 %v214
    %v509 = vunpack.c.l.b16 %v215
    %v510 = vunpack.c.h.b16 %v215
    %v511 = vunpack.c.l.b16 %v216
    %v512 = vunpack.c.h.b16 %v216
    %v513 = vunpack.c.l.b16 %v217
    %v514 = vunpack.c.h.b16 %v217
    %v515 = vunpack.c.l.b16 %v218
    %v516 = vunpack.c.h.b16 %v218
    %v517 = vunpack.c.l.b16 %v219
    %v518 = vunpack.c.h.b16 %v219
    %v519 = vunpack.c.l.b16 %v220
    %v520 = vunpack.c.h.b16 %v220
    %v521 = vunpack.c.l.b16 %v221
    %v522 = vunpack.c.h.b16 %v221
    %v523 = vunpack.c.l.b16 %v222
    %v524 = vunpack.c.h.b16 %v222
    %v525 = vunpack.c.l.b16 %v223
    %v526 = vunpack.c.h.b16 %v223
    %v527 = vunpack.c.l.b16 %v224
    %v528 = vunpack.c.h.b16 %v224
    %v529 = vunpack.c.l.b16 %v225
    %v530 = vunpack.c.h.b16 %v225
    %v531 = vunpack.c.l.b16 %v226
    %v532 = vunpack.c.h.b16 %v226
    %v533 = vunpack.c.l.b16 %v227
    %v534 = vunpack.c.h.b16 %v227
    %v535 = vunpack.c.l.b16 %v228
    %v536 = vunpack.c.h.b16 %v228
    %v537 = vunpack.c.l.b16 %v229
    %v538 = vunpack.c.h.b16 %v229
    %v539 = vunpack.c.l.b16 %v230
    %v540 = vunpack.c.h.b16 %v230
    %v541 = vunpack.c.l.b16 %v231
    %v542 = vunpack.c.h.b16 %v231
    %v543 = vunpack.c.l.b16 %v232
    %v544 = vunpack.c.h.b16 %v232
    %v545 = vunpack.c.l.b16 %v233
    %v546 = vunpack.c.h.b16 %v233
    %v547 = vunpack.c.l.b16 %v234
    %v548 = vunpack.c.h.b16 %v234
    %v549 = vunpack.c.l.b16 %v235
    %v550 = vunpack.c.h.b16 %v235
    %v551 = vunpack.c.l.b16 %v236
    %v552 = vunpack.c.h.b16 %v236
    %v553 = vunpack.c.l.b16 %v237
    %v554 = vunpack.c.h.b16 %v237
    %v555 = vunpack.c.l.b16 %v238
    %v556 = vunpack.c.h.b16 %v238
    %v557 = vunpack.c.l.b16 %v239
    %v558 = vunpack.c.h.b16 %v239
    %v559 = vunpack.c.l.b16 %v240
    %v560 = vunpack.c.h.b16 %v240
    %v561 = vunpack.c.l.b16 %v241
    %v562 = vunpack.c.h.b16 %v241
    %v563 = vunpack.c.l.b16 %v242
    %v564 = vunpack.c.h.b16 %v242
    %v565 = vunpack.c.l.b16 %v243
    %v566 = vunpack.c.h.b16 %v243
    %v567 = vunpack.c.l.b16 %v244
    %v568 = vunpack.c.h.b16 %v244
    %v569 = vunpack.c.l.b16 %v245
    %v570 = vunpack.c.h.b16 %v245
    %v571 = vunpack.c.l.b16 %v246
    %v572 = vunpack.c.h.b16 %v246
    %v573 = vunpack.c.l.b16 %v247
    %v574 = vunpack.c.h.b16 %v247
    %v575 = vunpack.c.l.b16 %v248
    %v576 = vunpack.c.h.b16 %v248
    %v577 = vunpack.c.l.b16 %v249
    %v578 = vunpack.c.h.b16 %v249
    %v579 = vunpack.c.l.b16 %v250
    %v580 = vunpack.c.h.b16 %v250
    %v581 = vunpack.c.l.b16 %v251
    %v582 = vunpack.c.h.b16 %v251
    %v583 = vunpack.c.l.b16 %v252
    %v584 = vunpack.c.h.b16 %v252
    %v585 = vunpack.c.l.b16 %v253
    %v586 = vunpack.c.h.b16 %v253
    %v587 = vunpack.c.l.b16 %v254
    %v588 = vunpack.c.h.b16 %v254
    %v589 = vunpack.c.l.b16 %v255
    %v590 = vunpack.c.h.b16 %v255
    %v591 = vunpack.c.l.b16 %v256
    %v592 = vunpack.c.h.b16 %v256
    %v593 = vunpack.c.l.b16 %v257
    %v594 = vunpack.c.h.b16 %v257
    %v595 = vunpack.c.l.b16 %v258
    %v596 = vunpack.c.h.b16 %v258
    %v597 = vunpack.c.l.b16 %v259
    %v598 = vunpack.c.h.b16 %v259
    %v599 = vunpack.c.l.b16 %v260
    %v600 = vunpack.c.h.b16 %v260
    %v601 = vunpack.c.l.b16 %v261
    %v602 = vunpack.c.h.b16 %v261
    %v603 = vunpack.c.l.b16 %v262
    %v604 = vunpack.c.h.b16 %v262
    %v605 = vpack.c.b16 %v383, %v381
    %v606 = vpack.c.b16 %v384, %v382
    %v607 = vpack.c.b16 %v387, %v385
    %v608 = vpack.c.b16 %v388, %v386
    %v609 = vpack.c.b16 %v391, %v389
    %v610 = vpack.c.b16 %v392, %v390
    %v611 = vpack.c.b16 %v395, %v393
    %v612 = vpack.c.b16 %v396, %v394
    %v613 = vpack.c.b16 %v399, %v397
    %v614 = vpack.c.b16 %v400, %v398
    %v615 = vpack.c.b16 %v403, %v401
    %v616 = vpack.c.b16 %v404, %v402
    %v617 = vpack.c.b16 %v407, %v405
    %v618 = vpack.c.b16 %v408, %v406
    %v619 = vpack.c.b16 %v411, %v409
    %v620 = vpack.c.b16 %v412, %v410
    %v621 = vpack.c.b16 %v415, %v413
    %v622 = vpack.c.b16 %v416, %v414
    %v623 = vpack.c.b16 %v419, %v417
    %v624 = vpack.c.b16 %v420, %v418
    %v625 = vpack.c.b16 %v423, %v421
    %v626 = vpack.c.b16 %v424, %v422
    %v627 = vpack.c.b16 %v427, %v425
    %v628 = vpack.c.b16 %v428, %v426
    %v629 = vpack.c.b16 %v431, %v429
    %v630 = vpack.c.b16 %v432, %v430
    %v631 = vpack.c.b16 %v435, %v433
    %v632 = vpack.c.b16 %v436, %v434
    %v633 = vpack.c.b16 %v439, %v437
    %v634 = vpack.c.b16 %v440, %v438
    %v635 = vpack.c.b16 %v443, %v441
    %v636 = vpack.c.b16 %v444, %v442
    %v637 = vpack.c.b16 %v447, %v445
    %v638 = vpack.c.b16 %v448, %v446
    %v639 = vpack.c.b16 %v451, %v449
    %v640 = vpack.c.b16 %v452, %v450
    %v641 = vpack.c.b16 %v455, %v453
    %v642 = vpack.c.b16 %v456, %v454
    %v643 = vpack.c.b16 %v459, %v457
    %v644 = vpack.c.b16 %v460, %v458
    %v645 = vpack.c.b16 %v463, %v461
    %v646 = vpack.c.b16 %v464, %v462
    %v647 = vpack.c.b16 %v467, %v465
    %v648 = vpack.c.b16 %v468, %v466
    %v649 = vpack.c.b16 %v471, %v469
    %v650 = vpack.c.b16 %v472, %v470
    %v651 = vpack.c.b16 %v475, %v473
    %v652 = vpack.c.b16 %v476, %v474
    %v653 = vpack.c.b16 %v479, %v477
    %v654 = vpack.c.b16 %v480, %v478
    %v655 = vpack.c.b16 %v483, %v481
    %v656 = vpack.c.b16 %v484, %v482
    %v657 = vpack.c.b16 %v487, %v485
    %v658 = vpack.c.b16 %v488, %v486
    %v659 = vpack.c.b16 %v491, %v489
    %v660 = vpack.c.b16 %v492, %v490
    %v661 = vpack.c.b16 %v495, %v493
    %v662 = vpack.c.b16 %v496, %v494
    %v663 = vpack.c.b16 %v499, %v497
    %v664 = vpack.c.b16 %v500, %v498
    %v665 = vpack.c.b16 %v503, %v501
    %v666 = vpack.c.b16 %v504, %v502
    %v667 = vpack.c.b16 %v507, %v505
    %v668 = vpack.c.b16 %v508, %v506
    %v669 = vpack.c.b16 %v511, %v509
    %v670 = vpack.c.b16 %v512, %v510
    %v671 = vpack.c.b16 %v515, %v513
    %v672 = vpack.c.b16 %v516, %v514
    %v673 = vpack.c.b16 %v519, %v517
    %v674 = vpack.c.b16 %v520, %v518
    %v675 = vpack.c.b16 %v523, %v521
    %v676 = vpack.c.b16 %v524, %v522
    %v677 = vpack.c.b16 %v527, %v525
    %v678 = vpack.c.b16 %v528, %v526
    %v679 = vpack.c.b16 %v531, %v529
    %v680 = vpack.c.b16 %v532, %v530
    %v681 = vpack.c.b16 %v535, %v533
    %v682 = vpack.c.b16 %v536, %v534
    %v683 = vpack.c.b16 %v539, %v537
    %v684 = vpack.c.b16 %v540, %v538
    %v685 = vpack.c.b16 %v543, %v541
    %v686 = vpack.c.b16 %v544, %v542
    %v687 = vpack.c.b16 %v547, %v545
    %v688 = vpack.c.b16 %v548, %v546
    %v689 = vpack.c.b16 %v551, %v549
    %v690 = vpack.c.b16 %v552, %v550
    %v691 = vpack.c.b16 %v555, %v553
    %v692 = vpack.c.b16 %v556, %v554
    %v693 = vpack.c.b16 %v559, %v557
    %v694 = vpack.c.b16 %v560, %v558
    %v695 = vpack.c.b16 %v563, %v561
    %v696 = vpack.c.b16 %v564, %v562
    %v697 = vpack.c.b16 %v567, %v565
    %v698 = vpack.c.b16 %v568, %v566
    %v699 = vpack.c.b16 %v571, %v569
    %v700 = vpack.c.b16 %v572, %v570
    %v701 = vpack.c.b16 %v575, %v573
    %v702 = vpack.c.b16 %v576, %v574
    %v703 = vpack.c.b16 %v579, %v577
    %v704 = vpack.c.b16 %v580, %v578
    %v705 = vpack.c.b16 %v583, %v581
    %v706 = vpack.c.b16 %v584, %v582
    %v707 = vpack.c.b16 %v587, %v585
    %v708 = vpack.c.b16 %v588, %v586
    %v709 = vpack.c.b16 %v591, %v589
    %v710 = vpack.c.b16 %v592, %v590
    %v711 = vpack.c.b16 %v595, %v593
    %v712 = vpack.c.b16 %v596, %v594
    %v713 = vpack.c.b16 %v599, %v597
    %v714 = vpack.c.b16 %v600, %v598
    %v715 = vpack.c.b16 %v603, %v601
    %v716 = vpack.c.b16 %v604, %v602
    %829 = vmatpush.bf16.msra.mxu0 %v619
    %830 = vmatpush.bf16.msra.mxu0 %v617
    %831 = vmatpush.bf16.msra.mxu0 %v615
    %832 = vmatpush.bf16.msra.mxu0 %v613
    %833 = vmatpush.bf16.msra.mxu0 %v611
    %834 = vmatpush.bf16.msra.mxu0 %v609
    %835 = vmatpush.bf16.msra.mxu0 %v607
    %836 = vmatpush.bf16.msra.mxu0 %v605
    %837 = vmatmul.bf16.gmra.mxu0 %v144
    %v838 = vpop.f32.mrf.mxu0
    %v839 = vadd.f32 %v265, %v838
    %v840 = vpop.f32.mrf.mxu0
    %841 = vdwg.mxu0
    %842 = vmatpush.bf16.msra.mxu0 %v635
    %843 = vmatpush.bf16.msra.mxu0 %v633
    %844 = vmatpush.bf16.msra.mxu0 %v631
    %845 = vmatpush.bf16.msra.mxu0 %v629
    %846 = vmatpush.bf16.msra.mxu0 %v627
    %847 = vmatpush.bf16.msra.mxu0 %v625
    %848 = vmatpush.bf16.msra.mxu0 %v623
    %849 = vmatpush.bf16.msra.mxu0 %v621
    %850 = vmatmul.bf16.gmra.mxu0 %v145
    %v851 = vpop.f32.mrf.mxu0
    %v852 = vadd.f32 %v839, %v851
    %v853 = vpop.f32.mrf.mxu0
    %854 = vdwg.mxu0
    %855 = vmatpush.bf16.msra.mxu0 %v651
    %856 = vmatpush.bf16.msra.mxu0 %v649
    %857 = vmatpush.bf16.msra.mxu0 %v647
    %858 = vmatpush.bf16.msra.mxu0 %v645
    %859 = vmatpush.bf16.msra.mxu0 %v643
    %860 = vmatpush.bf16.msra.mxu0 %v641
    %861 = vmatpush.bf16.msra.mxu0 %v639
    %862 = vmatpush.bf16.msra.mxu0 %v637
    %863 = vmatmul.bf16.gmra.mxu0 %v146
    %v864 = vpop.f32.mrf.mxu0
    %v865 = vadd.f32 %v852, %v864
    %v866 = vpop.f32.mrf.mxu0
    %867 = vdwg.mxu0
    %868 = vmatpush.bf16.msra.mxu0 %v667
    %869 = vmatpush.bf16.msra.mxu0 %v665
    %870 = vmatpush.bf16.msra.mxu0 %v663
    %871 = vmatpush.bf16.msra.mxu0 %v661
    %872 = vmatpush.bf16.msra.mxu0 %v659
    %873 = vmatpush.bf16.msra.mxu0 %v657
    %874 = vmatpush.bf16.msra.mxu0 %v655
    %875 = vmatpush.bf16.msra.mxu0 %v653
    %876 = vmatmul.bf16.gmra.mxu0 %v147
    %v877 = vpop.f32.mrf.mxu0
    %v878 = vadd.f32 %v865, %v877
    %v879 = vpop.f32.mrf.mxu0
    %880 = vdwg.mxu0
    %881 = vmatpush.bf16.msra.mxu0 %v683
    %882 = vmatpush.bf16.msra.mxu0 %v681
    %883 = vmatpush.bf16.msra.mxu0 %v679
    %884 = vmatpush.bf16.msra.mxu0 %v677
    %885 = vmatpush.bf16.msra.mxu0 %v675
    %886 = vmatpush.bf16.msra.mxu0 %v673
    %887 = vmatpush.bf16.msra.mxu0 %v671
    %888 = vmatpush.bf16.msra.mxu0 %v669
    %889 = vmatmul.bf16.gmra.mxu0 %v148
    %v890 = vpop.f32.mrf.mxu0
    %v891 = vadd.f32 %v878, %v890
    %v892 = vpop.f32.mrf.mxu0
    %893 = vdwg.mxu0
    %894 = vmatpush.bf16.msra.mxu0 %v699
    %895 = vmatpush.bf16.msra.mxu0 %v697
    %896 = vmatpush.bf16.msra.mxu0 %v695
    %897 = vmatpush.bf16.msra.mxu0 %v693
    %898 = vmatpush.bf16.msra.mxu0 %v691
    %899 = vmatpush.bf16.msra.mxu0 %v689
    %900 = vmatpush.bf16.msra.mxu0 %v687
    %901 = vmatpush.bf16.msra.mxu0 %v685
    %902 = vmatmul.bf16.gmra.mxu0 %v149
    %v903 = vpop.f32.mrf.mxu0
    %v904 = vadd.f32 %v891, %v903
    %v905 = vpop.f32.mrf.mxu0
    %906 = vdwg.mxu0
    %907 = vmatpush.bf16.msra.mxu0 %v715
    %908 = vmatpush.bf16.msra.mxu0 %v713
    %909 = vmatpush.bf16.msra.mxu0 %v711
    %910 = vmatpush.bf16.msra.mxu0 %v709
    %911 = vmatpush.bf16.msra.mxu0 %v707
    %912 = vmatpush.bf16.msra.mxu0 %v705
    %913 = vmatpush.bf16.msra.mxu0 %v703
    %914 = vmatpush.bf16.msra.mxu0 %v701
    %915 = vmatmul.bf16.gmra.mxu0 %v150
    %v916 = vpop.f32.mrf.mxu0
    %v917 = vadd.f32 %v904, %v916
    %v918 = vpop.f32.mrf.mxu0
    %919 = vdwg.mxu0
    %920 = vmatpush.bf16.msra.mxu0 %v620
    %921 = vmatpush.bf16.msra.mxu0 %v618
    %922 = vmatpush.bf16.msra.mxu0 %v616
    %923 = vmatpush.bf16.msra.mxu0 %v614
    %924 = vmatpush.bf16.msra.mxu0 %v612
    %925 = vmatpush.bf16.msra.mxu0 %v610
    %926 = vmatpush.bf16.msra.mxu0 %v608
    %927 = vmatpush.bf16.msra.mxu0 %v606
    %928 = vmatmul.bf16.gmra.mxu0 %v144
    %v929 = vpop.f32.mrf.mxu0
    %v930 = vadd.f32 %v266, %v929
    %v931 = vpop.f32.mrf.mxu0
    %932 = vdwg.mxu0
    %933 = vmatpush.bf16.msra.mxu0 %v636
    %934 = vmatpush.bf16.msra.mxu0 %v634
    %935 = vmatpush.bf16.msra.mxu0 %v632
    %936 = vmatpush.bf16.msra.mxu0 %v630
    %937 = vmatpush.bf16.msra.mxu0 %v628
    %938 = vmatpush.bf16.msra.mxu0 %v626
    %939 = vmatpush.bf16.msra.mxu0 %v624
    %940 = vmatpush.bf16.msra.mxu0 %v622
    %941 = vmatmul.bf16.gmra.mxu0 %v145
    %v942 = vpop.f32.mrf.mxu0
    %v943 = vadd.f32 %v930, %v942
    %v944 = vpop.f32.mrf.mxu0
    %945 = vdwg.mxu0
    %946 = vmatpush.bf16.msra.mxu0 %v652
    %947 = vmatpush.bf16.msra.mxu0 %v650
    %948 = vmatpush.bf16.msra.mxu0 %v648
    %949 = vmatpush.bf16.msra.mxu0 %v646
    %950 = vmatpush.bf16.msra.mxu0 %v644
    %951 = vmatpush.bf16.msra.mxu0 %v642
    %952 = vmatpush.bf16.msra.mxu0 %v640
    %953 = vmatpush.bf16.msra.mxu0 %v638
    %954 = vmatmul.bf16.gmra.mxu0 %v146
    %v955 = vpop.f32.mrf.mxu0
    %v956 = vadd.f32 %v943, %v955
    %v957 = vpop.f32.mrf.mxu0
    %958 = vdwg.mxu0
    %959 = vmatpush.bf16.msra.mxu0 %v668
    %960 = vmatpush.bf16.msra.mxu0 %v666
    %961 = vmatpush.bf16.msra.mxu0 %v664
    %962 = vmatpush.bf16.msra.mxu0 %v662
    %963 = vmatpush.bf16.msra.mxu0 %v660
    %964 = vmatpush.bf16.msra.mxu0 %v658
    %965 = vmatpush.bf16.msra.mxu0 %v656
    %966 = vmatpush.bf16.msra.mxu0 %v654
    %967 = vmatmul.bf16.gmra.mxu0 %v147
    %v968 = vpop.f32.mrf.mxu0
    %v969 = vadd.f32 %v956, %v968
    %v970 = vpop.f32.mrf.mxu0
    %971 = vdwg.mxu0
    %972 = vmatpush.bf16.msra.mxu0 %v684
    %973 = vmatpush.bf16.msra.mxu0 %v682
    %974 = vmatpush.bf16.msra.mxu0 %v680
    %975 = vmatpush.bf16.msra.mxu0 %v678
    %976 = vmatpush.bf16.msra.mxu0 %v676
    %977 = vmatpush.bf16.msra.mxu0 %v674
    %978 = vmatpush.bf16.msra.mxu0 %v672
    %979 = vmatpush.bf16.msra.mxu0 %v670
    %980 = vmatmul.bf16.gmra.mxu0 %v148
    %v981 = vpop.f32.mrf.mxu0
    %v982 = vadd.f32 %v969, %v981
    %v983 = vpop.f32.mrf.mxu0
    %984 = vdwg.mxu0
    %985 = vmatpush.bf16.msra.mxu0 %v700
    %986 = vmatpush.bf16.msra.mxu0 %v698
    %987 = vmatpush.bf16.msra.mxu0 %v696
    %988 = vmatpush.bf16.msra.mxu0 %v694
    %989 = vmatpush.bf16.msra.mxu0 %v692
    %990 = vmatpush.bf16.msra.mxu0 %v690
    %991 = vmatpush.bf16.msra.mxu0 %v688
    %992 = vmatpush.bf16.msra.mxu0 %v686
    %993 = vmatmul.bf16.gmra.mxu0 %v149
    %v994 = vpop.f32.mrf.mxu0
    %v995 = vadd.f32 %v982, %v994
    %v996 = vpop.f32.mrf.mxu0
    %997 = vdwg.mxu0
    %998 = vmatpush.bf16.msra.mxu0 %v716
    %999 = vmatpush.bf16.msra.mxu0 %v714
    %1000 = vmatpush.bf16.msra.mxu0 %v712
    %1001 = vmatpush.bf16.msra.mxu0 %v710
    %1002 = vmatpush.bf16.msra.mxu0 %v708
    %1003 = vmatpush.bf16.msra.mxu0 %v706
    %1004 = vmatpush.bf16.msra.mxu0 %v704
    %1005 = vmatpush.bf16.msra.mxu0 %v702
    %1006 = vmatmul.bf16.gmra.mxu0 %v150
    %v1007 = vpop.f32.mrf.mxu0
    %v1008 = vadd.f32 %v995, %v1007
    %v1009 = vpop.f32.mrf.mxu0
    %1010 = vdwg.mxu0
    %v1011 = vmax.f32 %v917, 0.0
    %v1012 = vmax.f32 %v1008, 0.0
    %v1013 = vld [vmem:[#allocation12] sm:$0xff]
    %v1014 = vld [vmem:[#allocation12 + $0x8] sm:$0xff]
    %s1015 = sld [smem:[#allocation2]]
    %v1016 = vstv %s1015
    %v1017 = vmul.f32 %v1013, %v1016
    %v1018 = vmul.f32 %v1014, %v1016
    %v1019 = vadd.f32 %v1011, %v1017
    %v1020 = vadd.f32 %v1012, %v1018
    %v1021 = vpack.c.bf16 %v1019, %v1019
    %v1022 = vpack.c.bf16 %v1020, %v1020
    %v1023 = vld [vmem:[#allocation9] sm:$0xff]
    %v1024 = vld [vmem:[#allocation9 + $0x8] sm:$0xff]
    %v1025 = vld [vmem:[#allocation9 + $0x10] sm:$0xff]
    %v1026 = vld [vmem:[#allocation9 + $0x18] sm:$0xff]
    %v1027 = vld [vmem:[#allocation9 + $0x20] sm:$0xff]
    %v1028 = vld [vmem:[#allocation9 + $0x28] sm:$0xff]
    %v1029 = vld [vmem:[#allocation9 + $0x30] sm:$0xff]
    %v1030 = vld [vmem:[#allocation9 + $0x38] sm:$0xff]
    %v1031 = vld [vmem:[#allocation9 + $0x40] sm:$0xff]
    %v1032 = vld [vmem:[#allocation9 + $0x48] sm:$0xff]
    %v1033 = vld [vmem:[#allocation9 + $0x50] sm:$0xff]
    %v1034 = vld [vmem:[#allocation9 + $0x58] sm:$0xff]
    %v1035 = vld [vmem:[#allocation9 + $0x60] sm:$0xff]
    %v1036 = vld [vmem:[#allocation9 + $0x68] sm:$0xff]
    %v1037 = vld [vmem:[#allocation9 + $0x70] sm:$0xff]
    %v1038 = vld [vmem:[#allocation9 + $0x78] sm:$0xff]
    %v1039 = vld [vmem:[#allocation9 + $0x80] sm:$0xff]
    %v1040 = vld [vmem:[#allocation9 + $0x88] sm:$0xff]
    %v1041 = vld [vmem:[#allocation9 + $0x90] sm:$0xff]
    %v1042 = vld [vmem:[#allocation9 + $0x98] sm:$0xff]
    %v1043 = vld [vmem:[#allocation9 + $0xa0] sm:$0xff]
    %v1044 = vld [vmem:[#allocation9 + $0xa8] sm:$0xff]
    %v1045 = vld [vmem:[#allocation9 + $0xb0] sm:$0xff]
    %v1046 = vld [vmem:[#allocation9 + $0xb8] sm:$0xff]
    %v1047 = vld [vmem:[#allocation9 + $0xc0] sm:$0xff]
    %v1048 = vld [vmem:[#allocation9 + $0xc8] sm:$0xff]
    %v1049 = vld [vmem:[#allocation9 + $0xd0] sm:$0xff]
    %v1050 = vld [vmem:[#allocation9 + $0xd8] sm:$0xff]
    %v1051 = vld [vmem:[#allocation9 + $0xe0] sm:$0xff]
    %v1052 = vld [vmem:[#allocation9 + $0xe8] sm:$0xff]
    %v1053 = vld [vmem:[#allocation9 + $0xf0] sm:$0xff]
    %v1054 = vld [vmem:[#allocation9 + $0xf8] sm:$0xff]
    %v1055 = vld [vmem:[%s5] sm:$0x3]
    %v1057 = vperm.slane %v1055, 0
    %v1058 = vperm.slane %v1055, 1
    %v1093 = vunpack.c.l.b16 %v1023
    %v1094 = vunpack.c.h.b16 %v1023
    %v1095 = vunpack.c.l.b16 %v1024
    %v1096 = vunpack.c.h.b16 %v1024
    %v1097 = vunpack.c.l.b16 %v1025
    %v1098 = vunpack.c.h.b16 %v1025
    %v1099 = vunpack.c.l.b16 %v1026
    %v1100 = vunpack.c.h.b16 %v1026
    %v1101 = vunpack.c.l.b16 %v1027
    %v1102 = vunpack.c.h.b16 %v1027
    %v1103 = vunpack.c.l.b16 %v1028
    %v1104 = vunpack.c.h.b16 %v1028
    %v1105 = vunpack.c.l.b16 %v1029
    %v1106 = vunpack.c.h.b16 %v1029
    %v1107 = vunpack.c.l.b16 %v1030
    %v1108 = vunpack.c.h.b16 %v1030
    %v1109 = vunpack.c.l.b16 %v1031
    %v1110 = vunpack.c.h.b16 %v1031
    %v1111 = vunpack.c.l.b16 %v1032
    %v1112 = vunpack.c.h.b16 %v1032
    %v1113 = vunpack.c.l.b16 %v1033
    %v1114 = vunpack.c.h.b16 %v1033
    %v1115 = vunpack.c.l.b16 %v1034
    %v1116 = vunpack.c.h.b16 %v1034
    %v1117 = vunpack.c.l.b16 %v1035
    %v1118 = vunpack.c.h.b16 %v1035
    %v1119 = vunpack.c.l.b16 %v1036
    %v1120 = vunpack.c.h.b16 %v1036
    %v1121 = vunpack.c.l.b16 %v1037
    %v1122 = vunpack.c.h.b16 %v1037
    %v1123 = vunpack.c.l.b16 %v1038
    %v1124 = vunpack.c.h.b16 %v1038
    %v1125 = vunpack.c.l.b16 %v1039
    %v1126 = vunpack.c.h.b16 %v1039
    %v1127 = vunpack.c.l.b16 %v1040
    %v1128 = vunpack.c.h.b16 %v1040
    %v1129 = vunpack.c.l.b16 %v1041
    %v1130 = vunpack.c.h.b16 %v1041
    %v1131 = vunpack.c.l.b16 %v1042
    %v1132 = vunpack.c.h.b16 %v1042
    %v1133 = vunpack.c.l.b16 %v1043
    %v1134 = vunpack.c.h.b16 %v1043
    %v1135 = vunpack.c.l.b16 %v1044
    %v1136 = vunpack.c.h.b16 %v1044
    %v1137 = vunpack.c.l.b16 %v1045
    %v1138 = vunpack.c.h.b16 %v1045
    %v1139 = vunpack.c.l.b16 %v1046
    %v1140 = vunpack.c.h.b16 %v1046
    %v1141 = vunpack.c.l.b16 %v1047
    %v1142 = vunpack.c.h.b16 %v1047
    %v1143 = vunpack.c.l.b16 %v1048
    %v1144 = vunpack.c.h.b16 %v1048
    %v1145 = vunpack.c.l.b16 %v1049
    %v1146 = vunpack.c.h.b16 %v1049
    %v1147 = vunpack.c.l.b16 %v1050
    %v1148 = vunpack.c.h.b16 %v1050
    %v1149 = vunpack.c.l.b16 %v1051
    %v1150 = vunpack.c.h.b16 %v1051
    %v1151 = vunpack.c.l.b16 %v1052
    %v1152 = vunpack.c.h.b16 %v1052
    %v1153 = vunpack.c.l.b16 %v1053
    %v1154 = vunpack.c.h.b16 %v1053
    %v1155 = vunpack.c.l.b16 %v1054
    %v1156 = vunpack.c.h.b16 %v1054
    %v1157 = vpack.c.b16 %v1095, %v1093
    %v1158 = vpack.c.b16 %v1096, %v1094
    %v1159 = vpack.c.b16 %v1099, %v1097
    %v1160 = vpack.c.b16 %v1100, %v1098
    %v1161 = vpack.c.b16 %v1103, %v1101
    %v1162 = vpack.c.b16 %v1104, %v1102
    %v1163 = vpack.c.b16 %v1107, %v1105
    %v1164 = vpack.c.b16 %v1108, %v1106
    %v1165 = vpack.c.b16 %v1111, %v1109
    %v1166 = vpack.c.b16 %v1112, %v1110
    %v1167 = vpack.c.b16 %v1115, %v1113
    %v1168 = vpack.c.b16 %v1116, %v1114
    %v1169 = vpack.c.b16 %v1119, %v1117
    %v1170 = vpack.c.b16 %v1120, %v1118
    %v1171 = vpack.c.b16 %v1123, %v1121
    %v1172 = vpack.c.b16 %v1124, %v1122
    %v1173 = vpack.c.b16 %v1127, %v1125
    %v1174 = vpack.c.b16 %v1128, %v1126
    %v1175 = vpack.c.b16 %v1131, %v1129
    %v1176 = vpack.c.b16 %v1132, %v1130
    %v1177 = vpack.c.b16 %v1135, %v1133
    %v1178 = vpack.c.b16 %v1136, %v1134
    %v1179 = vpack.c.b16 %v1139, %v1137
    %v1180 = vpack.c.b16 %v1140, %v1138
    %v1181 = vpack.c.b16 %v1143, %v1141
    %v1182 = vpack.c.b16 %v1144, %v1142
    %v1183 = vpack.c.b16 %v1147, %v1145
    %v1184 = vpack.c.b16 %v1148, %v1146
    %v1185 = vpack.c.b16 %v1151, %v1149
    %v1186 = vpack.c.b16 %v1152, %v1150
    %v1187 = vpack.c.b16 %v1155, %v1153
    %v1188 = vpack.c.b16 %v1156, %v1154
    %1221 = vmatpush.bf16.msra.mxu0 %v1171
    %1222 = vmatpush.bf16.msra.mxu0 %v1169
    %1223 = vmatpush.bf16.msra.mxu0 %v1167
    %1224 = vmatpush.bf16.msra.mxu0 %v1165
    %1225 = vmatpush.bf16.msra.mxu0 %v1163
    %1226 = vmatpush.bf16.msra.mxu0 %v1161
    %1227 = vmatpush.bf16.msra.mxu0 %v1159
    %1228 = vmatpush.bf16.msra.mxu0 %v1157
    %1229 = vmatmul.bf16.gmra.mxu0 %v1021
    %v1230 = vpop.f32.mrf.mxu0
    %v1231 = vadd.f32 %v1057, %v1230
    %v1232 = vpop.f32.mrf.mxu0
    %1233 = vdwg.mxu0
    %1234 = vmatpush.bf16.msra.mxu0 %v1187
    %1235 = vmatpush.bf16.msra.mxu0 %v1185
    %1236 = vmatpush.bf16.msra.mxu0 %v1183
    %1237 = vmatpush.bf16.msra.mxu0 %v1181
    %1238 = vmatpush.bf16.msra.mxu0 %v1179
    %1239 = vmatpush.bf16.msra.mxu0 %v1177
    %1240 = vmatpush.bf16.msra.mxu0 %v1175
    %1241 = vmatpush.bf16.msra.mxu0 %v1173
    %1242 = vmatmul.bf16.gmra.mxu0 %v1022
    %v1243 = vpop.f32.mrf.mxu0
    %v1244 = vadd.f32 %v1231, %v1243
    %v1245 = vpop.f32.mrf.mxu0
    %1246 = vdwg.mxu0
    %1247 = vmatpush.bf16.msra.mxu0 %v1172
    %1248 = vmatpush.bf16.msra.mxu0 %v1170
    %1249 = vmatpush.bf16.msra.mxu0 %v1168
    %1250 = vmatpush.bf16.msra.mxu0 %v1166
    %1251 = vmatpush.bf16.msra.mxu0 %v1164
    %1252 = vmatpush.bf16.msra.mxu0 %v1162
    %1253 = vmatpush.bf16.msra.mxu0 %v1160
    %1254 = vmatpush.bf16.msra.mxu0 %v1158
    %1255 = vmatmul.bf16.gmra.mxu0 %v1021
    %v1256 = vpop.f32.mrf.mxu0
    %v1257 = vadd.f32 %v1058, %v1256
    %v1258 = vpop.f32.mrf.mxu0
    %1259 = vdwg.mxu0
    %1260 = vmatpush.bf16.msra.mxu0 %v1188
    %1261 = vmatpush.bf16.msra.mxu0 %v1186
    %1262 = vmatpush.bf16.msra.mxu0 %v1184
    %1263 = vmatpush.bf16.msra.mxu0 %v1182
    %1264 = vmatpush.bf16.msra.mxu0 %v1180
    %1265 = vmatpush.bf16.msra.mxu0 %v1178
    %1266 = vmatpush.bf16.msra.mxu0 %v1176
    %1267 = vmatpush.bf16.msra.mxu0 %v1174
    %1268 = vmatmul.bf16.gmra.mxu0 %v1022
    %v1269 = vpop.f32.mrf.mxu0
    %v1270 = vadd.f32 %v1257, %v1269
    %v1271 = vpop.f32.mrf.mxu0
    %1272 = vdwg.mxu0
    %v1273 = vmax.f32 %v1244, 0.0
    %v1274 = vmax.f32 %v1270, 0.0
    %v1275 = vld [vmem:[#allocation13] sm:$0xff]
    %v1276 = vld [vmem:[#allocation13 + $0x8] sm:$0xff]
    %s1277 = sld [smem:[#allocation2 + $0x1]]
    %v1278 = vstv %s1277
    %v1279 = vmul.f32 %v1275, %v1278
    %v1280 = vmul.f32 %v1276, %v1278
    %v1281 = vadd.f32 %v1273, %v1279
    %v1282 = vadd.f32 %v1274, %v1280
    %v1283 = vpack.c.bf16 %v1281, %v1281
    %v1284 = vpack.c.bf16 %v1282, %v1282
    %v1285 = vld [vmem:[#allocation10] sm:$0xf]
    %v1286 = vld [vmem:[#allocation10 + $0x4] sm:$0xf]
    %v1287 = vld [vmem:[#allocation10 + $0x8] sm:$0xf]
    %v1288 = vld [vmem:[#allocation10 + $0xc] sm:$0xf]
    %v1289 = vld [vmem:[#allocation10 + $0x10] sm:$0xf]
    %v1290 = vld [vmem:[#allocation10 + $0x14] sm:$0xf]
    %v1291 = vld [vmem:[#allocation10 + $0x18] sm:$0xf]
    %v1292 = vld [vmem:[#allocation10 + $0x1c] sm:$0xf]
    %v1293 = vld [vmem:[#allocation10 + $0x20] sm:$0xf]
    %v1294 = vld [vmem:[#allocation10 + $0x24] sm:$0xf]
    %v1295 = vld [vmem:[#allocation10 + $0x28] sm:$0xf]
    %v1296 = vld [vmem:[#allocation10 + $0x2c] sm:$0xf]
    %v1297 = vld [vmem:[#allocation10 + $0x30] sm:$0xf]
    %v1298 = vld [vmem:[#allocation10 + $0x34] sm:$0xf]
    %v1299 = vld [vmem:[#allocation10 + $0x38] sm:$0xf]
    %v1300 = vld [vmem:[#allocation10 + $0x3c] sm:$0xf]
    %v1301 = vld [vmem:[#allocation10 + $0x40] sm:$0xf]
    %v1302 = vld [vmem:[#allocation10 + $0x44] sm:$0xf]
    %v1303 = vld [vmem:[#allocation10 + $0x48] sm:$0xf]
    %v1304 = vld [vmem:[#allocation10 + $0x4c] sm:$0xf]
    %v1305 = vld [vmem:[#allocation10 + $0x50] sm:$0xf]
    %v1306 = vld [vmem:[#allocation10 + $0x54] sm:$0xf]
    %v1307 = vld [vmem:[#allocation10 + $0x58] sm:$0xf]
    %v1308 = vld [vmem:[#allocation10 + $0x5c] sm:$0xf]
    %v1309 = vld [vmem:[#allocation10 + $0x60] sm:$0xf]
    %v1310 = vld [vmem:[#allocation10 + $0x64] sm:$0xf]
    %v1311 = vld [vmem:[#allocation10 + $0x68] sm:$0xf]
    %v1312 = vld [vmem:[#allocation10 + $0x6c] sm:$0xf]
    %v1313 = vld [vmem:[#allocation10 + $0x70] sm:$0xf]
    %v1314 = vld [vmem:[#allocation10 + $0x74] sm:$0xf]
    %v1315 = vld [vmem:[#allocation10 + $0x78] sm:$0xf]
    %v1316 = vld [vmem:[#allocation10 + $0x7c] sm:$0xf]
    %v1317 = vld [vmem:[%s7] sm:$0x1]
    %v1319 = vperm.slane %v1317, 0
    %v1353 = vunpack.c.l.b16 %v1285
    %v1354 = vunpack.c.l.b16 %v1286
    %v1355 = vunpack.c.l.b16 %v1287
    %v1356 = vunpack.c.l.b16 %v1288
    %v1357 = vunpack.c.l.b16 %v1289
    %v1358 = vunpack.c.l.b16 %v1290
    %v1359 = vunpack.c.l.b16 %v1291
    %v1360 = vunpack.c.l.b16 %v1292
    %v1361 = vunpack.c.l.b16 %v1293
    %v1362 = vunpack.c.l.b16 %v1294
    %v1363 = vunpack.c.l.b16 %v1295
    %v1364 = vunpack.c.l.b16 %v1296
    %v1365 = vunpack.c.l.b16 %v1297
    %v1366 = vunpack.c.l.b16 %v1298
    %v1367 = vunpack.c.l.b16 %v1299
    %v1368 = vunpack.c.l.b16 %v1300
    %v1369 = vunpack.c.l.b16 %v1301
    %v1370 = vunpack.c.l.b16 %v1302
    %v1371 = vunpack.c.l.b16 %v1303
    %v1372 = vunpack.c.l.b16 %v1304
    %v1373 = vunpack.c.l.b16 %v1305
    %v1374 = vunpack.c.l.b16 %v1306
    %v1375 = vunpack.c.l.b16 %v1307
    %v1376 = vunpack.c.l.b16 %v1308
    %v1377 = vunpack.c.l.b16 %v1309
    %v1378 = vunpack.c.l.b16 %v1310
    %v1379 = vunpack.c.l.b16 %v1311
    %v1380 = vunpack.c.l.b16 %v1312
    %v1381 = vunpack.c.l.b16 %v1313
    %v1382 = vunpack.c.l.b16 %v1314
    %v1383 = vunpack.c.l.b16 %v1315
    %v1384 = vunpack.c.l.b16 %v1316
    %v1385 = vpack.c.b16 %v1354, %v1353
    %v1386 = vpack.c.b16 %v1356, %v1355
    %v1387 = vpack.c.b16 %v1358, %v1357
    %v1388 = vpack.c.b16 %v1360, %v1359
    %v1389 = vpack.c.b16 %v1362, %v1361
    %v1390 = vpack.c.b16 %v1364, %v1363
    %v1391 = vpack.c.b16 %v1366, %v1365
    %v1392 = vpack.c.b16 %v1368, %v1367
    %v1393 = vpack.c.b16 %v1370, %v1369
    %v1394 = vpack.c.b16 %v1372, %v1371
    %v1395 = vpack.c.b16 %v1374, %v1373
    %v1396 = vpack.c.b16 %v1376, %v1375
    %v1397 = vpack.c.b16 %v1378, %v1377
    %v1398 = vpack.c.b16 %v1380, %v1379
    %v1399 = vpack.c.b16 %v1382, %v1381
    %v1400 = vpack.c.b16 %v1384, %v1383
    %1417 = vmatpush.bf16.msra.mxu0 %v1392
    %1418 = vmatpush.bf16.msra.mxu0 %v1391
    %1419 = vmatpush.bf16.msra.mxu0 %v1390
    %1420 = vmatpush.bf16.msra.mxu0 %v1389
    %1421 = vmatpush.bf16.msra.mxu0 %v1388
    %1422 = vmatpush.bf16.msra.mxu0 %v1387
    %1423 = vmatpush.bf16.msra.mxu0 %v1386
    %1424 = vmatpush.bf16.msra.mxu0 %v1385
    %1425 = vmatmul.bf16.gmra.mxu0 %v1283
    %v1426 = vpop.f32.mrf.mxu0
    %v1427 = vadd.f32 %v1319, %v1426
    %v1428 = vpop.f32.mrf.mxu0
    %1429 = vdwg.mxu0
    %1430 = vmatpush.bf16.msra.mxu0 %v1400
    %1431 = vmatpush.bf16.msra.mxu0 %v1399
    %1432 = vmatpush.bf16.msra.mxu0 %v1398
    %1433 = vmatpush.bf16.msra.mxu0 %v1397
    %1434 = vmatpush.bf16.msra.mxu0 %v1396
    %1435 = vmatpush.bf16.msra.mxu0 %v1395
    %1436 = vmatpush.bf16.msra.mxu0 %v1394
    %1437 = vmatpush.bf16.msra.mxu0 %v1393
    %1438 = vmatmul.bf16.gmra.mxu0 %v1284
    %v1439 = vpop.f32.mrf.mxu0
    %v1440 = vadd.f32 %v1427, %v1439
    %v1441 = vpop.f32.mrf.mxu0
    %1442 = vdwg.mxu0
    %1443 = vst [vmem:[#allocation15] sm:$0xff] %v1440
    // Predicated region
    $region70: #{tpu_custom_call.1} parent=1 // pred_check
      _
    $region71: #{tpu_custom_call.1} parent=1 // pred_check_branch
      %1445 = sbr.rel (0) target = $region73
    $region72: #{tpu_custom_call.1} parent=1 // pred_region
      %1447 = vsyncadd [#allocation4], 0
      %s1449 = sshll.u32 [#allocation15], 4
      %s1450 = int_to_ptr.vmem [resolvable:$true] %s1449
      %s1451 = sshll.u32 %s10, 4
      %s1452 = int_to_ptr.hbm [resolvable:$true] %s1451
      %1454 = dma.vmem_to_hbm [thread:$0]  %s1450, 128, %s1452, [#allocation4]
    $region73: #{tpu_custom_call.1} parent=1 // pred_fallthru
      _
    // Predicated region
    $region74: #{tpu_custom_call.1} parent=1 // pred_check
      _
    $region75: #{tpu_custom_call.1} parent=1 // pred_check_branch
      %1456 = sbr.rel (0) target = $region77
    $region76: #{tpu_custom_call.1} parent=1 // pred_region
      %1458 = dma.done [#allocation4], 128
    $region77: #{tpu_custom_call.1} parent=1 // pred_fallthru
      _
    %1459 = vsyncpa [#allocation3], 1
    %1460 = vsyncpa [#allocation8], 1
    %1461 = vsyncpa [#allocation11], 1
    %1462 = vsyncpa [#allocation14], 1
    %1463 = vsyncpa [#allocation4], 1
    %1464 = vsyncpa [#allocation5], 1

</llo_original>
